<compile_context>
chip_gen: v6e
topology: v6e:2x2x1
jax: 0.10.0
libtpu: 0.0.40
codegen_flags: <defaults>
</compile_context>

<pallas_src>
import jax
import jax.numpy as jnp
from jax.experimental import pallas as pl
from jax.experimental.pallas import tpu as pltpu

_LANE = 128
_SUBLANE = 8
_TILE = _SUBLANE * _LANE          # 1024 windows = one dense (8,128) f32 vreg tile
_MAX_TILES_PER_STEP = 64          # 64 tiles -> 64K windows per grid step


def _cdiv(a, b):
    return -(-a // b)


def _qmaxpool_kernel(x_ref, scale_ref, zp_ref, o_ref):
    # x_ref: (kk, 8, Lc) f32 -- element (c, s, l) is tap c of pooling window
    # r = s * (Rp // 8) + (block_offset + l).
    m = jnp.max(x_ref[...], axis=0)            # (8, Lc): pure VPU vmax over kk dense slabs
    scale = scale_ref[0]                       # SMEM scalars (free scalar slot)
    zp = zp_ref[0]
    # torch.quantize_per_tensor (quint8): q = clamp(nearbyint(x/scale)+zp, 0, 255).
    # jnp.round == round-half-to-even == nearbyint; keep the divide (not *1/scale)
    # so ties match the reference bit-exactly.  Codes <= 255 are exact in f32.
    q = jnp.clip(jnp.round(m / scale) + zp, 0.0, 255.0)
    o_ref[...] = (q - zp) * scale              # dequantize -> fully dense (8, Lc) store


def quantized_maxpool2d(x, scale, zero_point, kernel_size=3):
    """dequantize(maxpool2d(quantize(x))) with quint8 quantization.

    x: (N, C, H, W) float32.  Returns (N, C, OH, OW) float32.
    """
    N, C, H, W = x.shape
    k = kernel_size
    oh = (H - k) // k + 1
    ow = (W - k) // k + 1
    kk = k * k
    R = N * C * oh * ow

    # Wrapper im2col: each disjoint k x k window becomes one COLUMN -> (kk, R).
    xt = x[:, :, : oh * k, : ow * k].reshape(N, C, oh, k, ow, k)
    xt = jnp.transpose(xt, (3, 5, 0, 1, 2, 4)).reshape(kk, R)

    # Grid sizing: single step up to 64K windows, equal steps beyond that.
    num_tiles = _cdiv(R, _TILE)
    steps = _cdiv(num_tiles, _MAX_TILES_PER_STEP)
    tiles_per_step = _cdiv(num_tiles, steps)
    Rp = steps * tiles_per_step * _TILE
    if Rp != R:
        # Padded columns are all-zero windows; sliced off after the kernel.
        xt = jnp.pad(xt, ((0, 0), (0, Rp - R)))

    # Free row-major reshape to the dense 3-D layout (kk, 8, Rp/8).
    cols = Rp // _SUBLANE
    xt3 = xt.reshape(kk, _SUBLANE, cols)
    lc = tiles_per_step * _LANE                 # lane-columns per grid step

    scale_arr = jnp.full((1,), scale, dtype=jnp.float32)
    zp_arr = jnp.full((1,), zero_point, dtype=jnp.float32)

    out = pl.pallas_call(
        _qmaxpool_kernel,
        out_shape=jax.ShapeDtypeStruct((_SUBLANE, cols), jnp.float32),
        grid=(steps,),
        in_specs=[
            pl.BlockSpec((kk, _SUBLANE, lc), lambda i: (0, 0, i)),
            pl.BlockSpec(memory_space=pltpu.MemorySpace.SMEM),
            pl.BlockSpec(memory_space=pltpu.MemorySpace.SMEM),
        ],
        out_specs=pl.BlockSpec((_SUBLANE, lc), lambda i: (0, i)),
        compiler_params=pltpu.CompilerParams(
            dimension_semantics=("parallel",),
        ),
        cost_estimate=pl.CostEstimate(
            flops=(kk + 5) * Rp,
            transcendentals=0,
            bytes_accessed=(kk + 1) * Rp * 4,
        ),
    )(xt3, scale_arr, zp_arr)

    # Row-major flatten of (8, Rp/8) restores window order r = s*(Rp/8) + c.
    return out.reshape(Rp)[:R].reshape(N, C, oh, ow)


if __name__ == "__main__":
    key = jax.random.PRNGKey(0)
    # Small shape consistent with the module's forward: NCHW = (2, 4, 16, 16).
    x = jax.random.uniform(
        key, (2, 4, 16, 16), dtype=jnp.float32, minval=-1.0, maxval=26.0
    )

    scale, zero_point = 0.1, 5   # module __init__ args (dtype = quint8)

    y = quantized_maxpool2d(x, scale, zero_point, kernel_size=3)
    y = jax.block_until_ready(y)

    # Pure-JAX reference with the original op order (quantize -> pool -> deq).
    q = jnp.clip(jnp.round(x / scale) + zero_point, 0.0, 255.0)
    m = jax.lax.reduce_window(
        q, -jnp.inf, jax.lax.max, (1, 1, 3, 3), (1, 1, 3, 3), "VALID"
    )
    ref = (m - zero_point) * scale

    assert y.shape == (2, 4, 5, 5), y.shape
    assert jnp.allclose(y, ref, atol=1e-6), float(jnp.max(jnp.abs(y - ref)))
    print("KERNEL_OK")
</pallas_src>

<mosaic_0001>
module attributes {stable_mosaic.version = 11 : i64} {
  func.func @_qmaxpool_kernel(%arg0: i32, %arg1: memref<9x8x128xf32, #tpu.memory_space<vmem>>, %arg2: memref<1xf32, #tpu.memory_space<smem>>, %arg3: memref<1xf32, #tpu.memory_space<smem>>, %arg4: memref<8x128xf32, #tpu.memory_space<vmem>>) attributes {dimension_semantics = [#tpu.dimension_semantics<parallel>], iteration_bounds = array<i64: 1>, scalar_prefetch = 0 : i64, scratch_operands = 0 : i64, tpu.core_type = #tpu.core_type<tc>, window_params = [{transform_indices = @transform_0, window_bounds = array<i64: 9, 8, 128>}, {transform_indices = @transform_1, window_bounds = array<i64: 1>}, {transform_indices = @transform_2, window_bounds = array<i64: 1>}, {transform_indices = @transform_3, window_bounds = array<i64: 8, 128>}]} {
    %c0 = arith.constant 0 : index
    %c0_0 = arith.constant 0 : index
    %c0_1 = arith.constant 0 : index
    %0 = vector.load %arg1[%c0, %c0_0, %c0_1] : memref<9x8x128xf32, #tpu.memory_space<vmem>>, vector<9x8x128xf32>
    %cst = arith.constant dense<0xFF800000> : vector<8x128xf32>
    %1 = vector.multi_reduction <maximumf>, %0, %cst [0] : vector<9x8x128xf32> to vector<8x128xf32>
    %c0_2 = arith.constant 0 : index
    %2 = memref.load %arg2[%c0_2] : memref<1xf32, #tpu.memory_space<smem>>
    %c0_3 = arith.constant 0 : index
    %3 = memref.load %arg3[%c0_3] : memref<1xf32, #tpu.memory_space<smem>>
    %4 = vector.broadcast %2 : f32 to vector<8x128xf32>
    %5 = arith.divf %1, %4 : vector<8x128xf32>
    %6 = math.roundeven %5 : vector<8x128xf32>
    %7 = vector.broadcast %3 : f32 to vector<8x128xf32>
    %8 = arith.addf %6, %7 : vector<8x128xf32>
    %cst_4 = arith.constant 0.000000e+00 : f32
    %cst_5 = arith.constant 2.550000e+02 : f32
    %9 = vector.broadcast %cst_4 : f32 to vector<8x128xf32>
    %10 = arith.maximumf %9, %8 : vector<8x128xf32>
    %11 = vector.broadcast %cst_5 : f32 to vector<8x128xf32>
    %12 = arith.minimumf %11, %10 : vector<8x128xf32>
    %13 = vector.broadcast %3 : f32 to vector<8x128xf32>
    %14 = arith.subf %12, %13 : vector<8x128xf32>
    %15 = vector.broadcast %2 : f32 to vector<8x128xf32>
    %16 = arith.mulf %14, %15 : vector<8x128xf32>
    %c0_6 = arith.constant 0 : index
    %c0_7 = arith.constant 0 : index
    %17 = vector.load %arg4[%c0_6, %c0_7] : memref<8x128xf32, #tpu.memory_space<vmem>>, vector<8x128xf32>
    tpu.vector_store %arg4[%c0_6, %c0_7], %16 {strides = array<i32>} : memref<8x128xf32, #tpu.memory_space<vmem>>, vector<8x128xf32>,
    return
  }
  func.func @transform_0(%arg0: i32) -> (i32, i32, i32) {
    %c0_i32 = arith.constant 0 : i32
    %c0_i32_0 = arith.constant 0 : i32
    %c0_i32_1 = arith.constant 0 : i32
    return %c0_i32, %c0_i32_0, %arg0 : i32, i32, i32
  }
  func.func @transform_1(%arg0: i32) -> i32 {
    %c0_i32 = arith.constant 0 : i32
    %c0_i32_0 = arith.constant 0 : i32
    return %c0_i32 : i32
  }
  func.func @transform_2(%arg0: i32) -> i32 {
    %c0_i32 = arith.constant 0 : i32
    %c0_i32_0 = arith.constant 0 : i32
    return %c0_i32 : i32
  }
  func.func @transform_3(%arg0: i32) -> (i32, i32) {
    %c0_i32 = arith.constant 0 : i32
    %c0_i32_0 = arith.constant 0 : i32
    return %c0_i32, %arg0 : i32, i32
  }
}

</mosaic_0001>

<llo_original>
// kernel: tpu_custom_call.1
$region0: #{tpu_custom_call.1}
  #allocation0 [shape = 'u32[]', space=smem, size = 0x4, offset = 0x4, fixed_abs, tag = 'smem constant byte address 0x4 - core index']
  #allocation1 [shape = 'u32[144,128]{1,0:T(1,128)}', space=vmem, size = 0x12000, scoped, tag = 'internal scratch']
  #allocation2 [shape = 'f32[1]{0:T(128)S(6)}', space=smem, size = 0x200, scoped, tag = 'scoped memory for tpu_custom_call.1']
  #allocation3 [shape = 'f32[1]{0:T(128)S(6)}', space=smem, size = 0x200, scoped, tag = 'scoped memory for tpu_custom_call.1']
  %s0 = inlined_call_operand.hbm [shape: f32[9,8,128], index: 0, kind: input, shape index: {}]
  %s1 = inlined_call_operand.<no memory space> [shape: f32[1], index: 1, kind: input, shape index: {}]
  %s2 = inlined_call_operand.<no memory space> [shape: f32[1], index: 2, kind: input, shape index: {}]
  %s3 = inlined_call_operand.hbm [shape: f32[8,128], index: 3, kind: output, shape index: {}]
  %s4 = sld [smem:[#allocation0]]
  $region26: #{tpu_custom_call.1} parent=0
    _
  %s6 = ssub.s32 1, %s4
  %s7 = scalar_select 0, %s6, %s4
  %8 = sst [smem:[#allocation2]] %s1
  %9 = sst [smem:[#allocation3]] %s2
  $region1: #{tpu_custom_call.1} parent=0
    #allocation4 [shape = 'u8[36864]{0}', space=vmem, size = 0x9000, scoped, tag = 'input window, operand 0, single buffered']
    #allocation5 [shape = 's32[1]{0}', space=sflag, size = 0x4, scoped, tag = 'scoped memory for tpu_custom_call.1']
    #allocation6 [shape = 's32[1]{0}', space=sflag, size = 0x4, scoped, tag = 'scoped memory for tpu_custom_call.1']
    #allocation7 [shape = 'u8[4096]{0}', space=vmem, size = 0x1000, scoped, tag = 'output window, operand 0, single buffered']
    %10 = vsyncpa [#allocation5], 0
    %11 = vsyncpa [#allocation6], 0
    // Predicated region
    $region2: #{tpu_custom_call.1} parent=1 // pred_check
      _
    $region3: #{tpu_custom_call.1} parent=1 // pred_check_branch
      %13 = sbr.rel (0) target = $region5
    $region4: #{tpu_custom_call.1} parent=1 // pred_region
      %s15 = ssub.s32 1152, 1152
      %16 = vsyncadd [#allocation5], %s15
      %s17 = sshll.u32 [#allocation4], 4
      %s18 = int_to_ptr.vmem [resolvable:$true] %s17
      %23 = dma.hbm_to_vmem [thread:$0]  %s0, 1152, %s18, [#allocation5], 128, 128, 8
    $region5: #{tpu_custom_call.1} parent=1 // pred_fallthru
      _
    // Predicated region
    $region6: #{tpu_custom_call.1} parent=1 // pred_check
      _
    $region7: #{tpu_custom_call.1} parent=1 // pred_check_branch
      %25 = sbr.rel (0) target = $region9
    $region8: #{tpu_custom_call.1} parent=1 // pred_region
      _
    $region9: #{tpu_custom_call.1} parent=1 // pred_fallthru
      _
    // Predicated region
    $region10: #{tpu_custom_call.1} parent=1 // pred_check
      _
    $region11: #{tpu_custom_call.1} parent=1 // pred_check_branch
      %27 = sbr.rel (0) target = $region13
    $region12: #{tpu_custom_call.1} parent=1 // pred_region
      _
    $region13: #{tpu_custom_call.1} parent=1 // pred_fallthru
      _
    // Predicated region
    $region14: #{tpu_custom_call.1} parent=1 // pred_check
      _
    $region15: #{tpu_custom_call.1} parent=1 // pred_check_branch
      %29 = sbr.rel (0) target = $region17
    $region16: #{tpu_custom_call.1} parent=1 // pred_region
      %30 = dma.done [#allocation5], 1152
    $region17: #{tpu_custom_call.1} parent=1 // pred_fallthru
      _
    %v31 = vld [vmem:[#allocation4] sm:$0xff]
    %v32 = vld [vmem:[#allocation4 + $0x8] sm:$0xff]
    %v33 = vld [vmem:[#allocation4 + $0x10] sm:$0xff]
    %v34 = vld [vmem:[#allocation4 + $0x18] sm:$0xff]
    %v35 = vld [vmem:[#allocation4 + $0x20] sm:$0xff]
    %v36 = vld [vmem:[#allocation4 + $0x28] sm:$0xff]
    %v37 = vld [vmem:[#allocation4 + $0x30] sm:$0xff]
    %v38 = vld [vmem:[#allocation4 + $0x38] sm:$0xff]
    %v39 = vld [vmem:[#allocation4 + $0x40] sm:$0xff]
    %v40 = vmax.f32 %v31, %v35
    %v41 = vmax.f32 %v32, %v36
    %v42 = vmax.f32 %v33, %v37
    %v43 = vmax.f32 %v34, %v38
    %v44 = vmax.f32 %v40, %v39
    %v45 = vmax.f32 %v44, %v41
    %v46 = vmax.f32 %v42, %v43
    %v47 = vmax.f32 %v45, %v46
    %s48 = sld [smem:[#allocation2]]
    %s49 = sld [smem:[#allocation3]]
    %v50 = vstv %s48
    %v51 = vrcp.pop %v50
    %v52 = vmul.f32 %v47, %v51
    %v53 = vround.ne.pseudo %v52
    %v54 = vstv %s49
    %v55 = vadd.f32 %v53, %v54
    %v56 = vmax.f32 %v55, 0.0
    %v57 = vmin.f32 %v56, 255.0
    %v58 = vsub.f32 %v57, %v54
    %v59 = vmul.f32 %v58, %v50
    %60 = vst [vmem:[#allocation7] sm:$0xff] %v59
    // Predicated region
    $region18: #{tpu_custom_call.1} parent=1 // pred_check
      _
    $region19: #{tpu_custom_call.1} parent=1 // pred_check_branch
      %62 = sbr.rel (0) target = $region21
    $region20: #{tpu_custom_call.1} parent=1 // pred_region
      %s64 = ssub.s32 128, 128
      %65 = vsyncadd [#allocation6], %s64
      %s67 = sshll.u32 [#allocation7], 4
      %s68 = int_to_ptr.vmem [resolvable:$true] %s67
      %70 = dma.vmem_to_hbm [thread:$0]  %s68, 128, %s3, [#allocation6]
    $region21: #{tpu_custom_call.1} parent=1 // pred_fallthru
      _
    // Predicated region
    $region22: #{tpu_custom_call.1} parent=1 // pred_check
      _
    $region23: #{tpu_custom_call.1} parent=1 // pred_check_branch
      %72 = sbr.rel (0) target = $region25
    $region24: #{tpu_custom_call.1} parent=1 // pred_region
      %73 = dma.done [#allocation6], 128
    $region25: #{tpu_custom_call.1} parent=1 // pred_fallthru
      _
    %74 = vsyncpa [#allocation5], 1
    %75 = vsyncpa [#allocation6], 1

</llo_original>
